<compile_context>
chip_gen: v7x
topology: tpu7x:2x2x1
jax: 0.10.0
libtpu: 0.0.40
codegen_flags: <defaults>
</compile_context>

<pallas_src>
import jax
import jax.numpy as jnp
from jax.experimental import pallas as pl
from jax.experimental.pallas import tpu as pltpu


_IN_FEATURES = 120
_HIDDEN = 64
_OUT_W = 8          # lane-padded logit width (real logit in column 0) -> 32 B/row writeback
_BN_EPS = 1e-5
_MIN_TILE = 1024    # below this, more grid steps just add per-step overhead


def _discriminator_kernel(x_ref, w1_ref, w2_ref, w3_ref, w4_ref,
                          b1_ref, b2_ref, b3_ref, b4_ref, o_ref):
    """Fused MLP: relu(x@W1+b1) -> relu(@W2'+b2') -> relu(@W3'+b3') -> @W4'+b4'.

    x arrives as f32 straight from HBM; the bf16 cast for the MXU happens here
    (VPU work hidden under the streaming DMA). Accumulation / bias / ReLU stay f32.
    """
    x = x_ref[...].astype(w1_ref.dtype)                       # (tb, 120) bf16

    h = jnp.dot(x, w1_ref[...], preferred_element_type=jnp.float32)
    h = jnp.maximum(h + b1_ref[...], 0.0)

    h = jnp.dot(h.astype(w2_ref.dtype), w2_ref[...],
                preferred_element_type=jnp.float32)
    h = jnp.maximum(h + b2_ref[...], 0.0)

    h = jnp.dot(h.astype(w3_ref.dtype), w3_ref[...],
                preferred_element_type=jnp.float32)
    h = jnp.maximum(h + b3_ref[...], 0.0)

    out = jnp.dot(h.astype(w4_ref.dtype), w4_ref[...],
                  preferred_element_type=jnp.float32)
    o_ref[...] = (out + b4_ref[...]).astype(o_ref.dtype)      # (tb, 8) f32


def _round_up(n, m):
    return ((n + m - 1) // m) * m


def _choose_tile(batch, tile_b):
    """Batch tile: large (amortize grid overhead), multiple of 8 sublanes,
    capped so big batches keep >= 4 grid steps (>= 2 per TC on v7x megacore)."""
    b8 = _round_up(batch, 8)
    tb = min(_round_up(tile_b, 8), b8)
    if b8 >= 4 * _MIN_TILE:
        tb = min(tb, _round_up(pl.cdiv(b8, 4), 8))
    return max(tb, 8)


def discriminator_forward(x, params, *, tile_b=8192, compute_dtype=jnp.bfloat16):
    """x: (B, 120) float32. Returns (B, 1) float32 (eval-mode Discriminator)."""
    B, F = x.shape
    assert F == _IN_FEATURES

    # --- Fold eval-mode BatchNorm1d into per-feature (scale, shift) ----------
    def bn_fold(bn):
        gamma, beta, mean, var = bn
        scale = gamma / jnp.sqrt(var + _BN_EPS)
        shift = beta - mean * scale
        return scale, shift

    s1, t1 = bn_fold(params["bn1"])
    s2, t2 = bn_fold(params["bn2"])
    s3, t3 = bn_fold(params["bn3"])

    # --- Fold each BN affine into the NEXT Linear layer ----------------------
    # (relu_out * s + t) @ W + b  ==  relu_out @ (s[:,None]*W) + (t @ W + b)
    w1, b1 = params["w1"], params["b1"]
    w2 = params["w2"] * s1[:, None]
    b2 = params["b2"] + t1 @ params["w2"]
    w3 = params["w3"] * s2[:, None]
    b3 = params["b3"] + t2 @ params["w3"]
    w4 = params["w4"] * s3[:, None]
    b4 = params["b4"] + t3 @ params["w4"]

    # --- Shape constant operands: head padded to 8 lanes, biases as (1, N) ----
    w4p = jnp.zeros((_HIDDEN, _OUT_W), jnp.float32).at[:, :1].set(w4)
    b4p = jnp.zeros((1, _OUT_W), jnp.float32).at[:, :1].set(b4[None, :])
    b1r = b1[None, :].astype(jnp.float32)
    b2r = b2[None, :].astype(jnp.float32)
    b3r = b3[None, :].astype(jnp.float32)

    # Weights go through the MXU in bf16 (f32 accumulation); tiny, VMEM-resident.
    w1c = w1.astype(compute_dtype)
    w2c = w2.astype(compute_dtype)
    w3c = w3.astype(compute_dtype)
    w4c = w4p.astype(compute_dtype)

    # --- Batch tiling (no wrapper padding / copies of x) ----------------------
    tb = _choose_tile(B, tile_b)
    grid = (pl.cdiv(B, tb),)
    const = lambda i: (0, 0)                   # weights/biases fetched once, stay resident

    w_itemsize = jnp.dtype(compute_dtype).itemsize
    cost = pl.CostEstimate(
        flops=2 * B * (_IN_FEATURES * _HIDDEN + 2 * _HIDDEN * _HIDDEN
                       + _HIDDEN * _OUT_W),
        transcendentals=0,
        bytes_accessed=(B * _IN_FEATURES * 4                     # f32 x stream
                        + B * _OUT_W * 4                         # f32 narrow output
                        + (w1c.size + w2c.size + w3c.size + w4c.size) * w_itemsize
                        + (b1r.size + b2r.size + b3r.size + b4p.size) * 4),
    )

    out = pl.pallas_call(
        _discriminator_kernel,
        out_shape=jax.ShapeDtypeStruct((B, _OUT_W), jnp.float32),
        grid=grid,
        in_specs=[
            pl.BlockSpec((tb, _IN_FEATURES), lambda i: (i, 0)),   # x streamed (f32, unpadded)
            pl.BlockSpec((_IN_FEATURES, _HIDDEN), const),         # W1
            pl.BlockSpec((_HIDDEN, _HIDDEN), const),              # W2 (BN-folded)
            pl.BlockSpec((_HIDDEN, _HIDDEN), const),              # W3 (BN-folded)
            pl.BlockSpec((_HIDDEN, _OUT_W), const),               # W4 (BN-folded, 8-lane)
            pl.BlockSpec((1, _HIDDEN), const),                    # b1
            pl.BlockSpec((1, _HIDDEN), const),                    # b2 (BN-folded)
            pl.BlockSpec((1, _HIDDEN), const),                    # b3 (BN-folded)
            pl.BlockSpec((1, _OUT_W), const),                     # b4 (BN-folded, 8-lane)
        ],
        out_specs=pl.BlockSpec((tb, _OUT_W), lambda i: (i, 0)),
        compiler_params=pltpu.CompilerParams(
            dimension_semantics=("parallel",),
            vmem_limit_bytes=48 * 1024 * 1024),
        cost_estimate=cost,
    )(x, w1c, w2c, w3c, w4c, b1r, b2r, b3r, b4p)

    return out[:, :1]


def init_params(key):
    """PyTorch-default-style init: Linear ~ U(-1/sqrt(fan_in), 1/sqrt(fan_in)),
    BatchNorm1d gamma=1, beta=0, running_mean=0, running_var=1."""
    dims = [(120, 64), (64, 64), (64, 64), (64, 1)]
    params = {}
    keys = jax.random.split(key, 2 * len(dims))
    for i, (fan_in, fan_out) in enumerate(dims):
        bound = 1.0 / jnp.sqrt(jnp.float32(fan_in))
        w = jax.random.uniform(keys[2 * i], (fan_in, fan_out),
                               minval=-bound, maxval=bound, dtype=jnp.float32)
        b = jax.random.uniform(keys[2 * i + 1], (fan_out,),
                               minval=-bound, maxval=bound, dtype=jnp.float32)
        params[f"w{i + 1}"] = w
        params[f"b{i + 1}"] = b
    for j in (1, 2, 3):
        params[f"bn{j}"] = (
            jnp.ones((64,), jnp.float32),    # gamma
            jnp.zeros((64,), jnp.float32),   # beta
            jnp.zeros((64,), jnp.float32),   # running_mean
            jnp.ones((64,), jnp.float32),    # running_var
        )
    return params


def _reference_forward(x, params):
    """Pure-JAX f32 reference of the eval-mode PyTorch module."""
    h = x
    for i in (1, 2, 3):
        h = jnp.maximum(h @ params[f"w{i}"] + params[f"b{i}"], 0.0)
        gamma, beta, mean, var = params[f"bn{i}"]
        h = (h - mean) / jnp.sqrt(var + _BN_EPS) * gamma + beta
    return h @ params["w4"] + params["b4"]


if __name__ == "__main__":
    key = jax.random.PRNGKey(0)
    k_param, k_x = jax.random.split(key)
    params = init_params(k_param)

    # Small, divisible case.
    B = 8
    x = jax.random.normal(k_x, (B, 120), dtype=jnp.float32)
    out = jax.block_until_ready(discriminator_forward(x, params))
    ref = _reference_forward(x, params)
    assert out.shape == (B, 1)
    # Tolerance relaxed vs pure-f32 because x / weights go through the MXU in
    # bf16 (f32 accumulation) across 4 layers.
    assert jnp.allclose(out, ref, atol=5e-2, rtol=5e-2), (
        float(jnp.max(jnp.abs(out - ref))))

    # Ragged case: batch not a multiple of the tile exercises the masked last block.
    B2 = 20
    x2 = jax.random.normal(jax.random.PRNGKey(1), (B2, 120), dtype=jnp.float32)
    out2 = jax.block_until_ready(discriminator_forward(x2, params, tile_b=16))
    ref2 = _reference_forward(x2, params)
    assert out2.shape == (B2, 1)
    assert jnp.allclose(out2, ref2, atol=5e-2, rtol=5e-2), (
        float(jnp.max(jnp.abs(out2 - ref2))))

    print("KERNEL_OK")
</pallas_src>

<mosaic_0001>
module attributes {stable_mosaic.version = 11 : i64} {
  func.func @_discriminator_kernel(%arg0: i32, %arg1: memref<8x120xf32, #tpu.memory_space<vmem>>, %arg2: memref<120x64xbf16, #tpu.memory_space<vmem>>, %arg3: memref<64x64xbf16, #tpu.memory_space<vmem>>, %arg4: memref<64x64xbf16, #tpu.memory_space<vmem>>, %arg5: memref<64x8xbf16, #tpu.memory_space<vmem>>, %arg6: memref<1x64xf32, #tpu.memory_space<vmem>>, %arg7: memref<1x64xf32, #tpu.memory_space<vmem>>, %arg8: memref<1x64xf32, #tpu.memory_space<vmem>>, %arg9: memref<1x8xf32, #tpu.memory_space<vmem>>, %arg10: memref<8x8xf32, #tpu.memory_space<vmem>>) attributes {dimension_semantics = [#tpu.dimension_semantics<parallel>], iteration_bounds = array<i64: 1>, scalar_prefetch = 0 : i64, scratch_operands = 0 : i64, tpu.core_type = #tpu.core_type<tc>, window_params = [{transform_indices = @transform_0, window_bounds = array<i64: 8, 120>}, {pipeline_mode = #tpu.pipeline_mode<synchronous>, transform_indices = @transform_1, window_bounds = array<i64: 120, 64>}, {pipeline_mode = #tpu.pipeline_mode<synchronous>, transform_indices = @transform_2, window_bounds = array<i64: 64, 64>}, {pipeline_mode = #tpu.pipeline_mode<synchronous>, transform_indices = @transform_3, window_bounds = array<i64: 64, 64>}, {pipeline_mode = #tpu.pipeline_mode<synchronous>, transform_indices = @transform_4, window_bounds = array<i64: 64, 8>}, {pipeline_mode = #tpu.pipeline_mode<synchronous>, transform_indices = @transform_5, window_bounds = array<i64: 1, 64>}, {pipeline_mode = #tpu.pipeline_mode<synchronous>, transform_indices = @transform_6, window_bounds = array<i64: 1, 64>}, {pipeline_mode = #tpu.pipeline_mode<synchronous>, transform_indices = @transform_7, window_bounds = array<i64: 1, 64>}, {pipeline_mode = #tpu.pipeline_mode<synchronous>, transform_indices = @transform_8, window_bounds = array<i64: 1, 8>}, {transform_indices = @transform_9, window_bounds = array<i64: 8, 8>}]} {
    %c0 = arith.constant 0 : index
    %c0_0 = arith.constant 0 : index
    %0 = vector.load %arg1[%c0, %c0_0] : memref<8x120xf32, #tpu.memory_space<vmem>>, vector<8x120xf32>
    %1 = arith.truncf %0 : vector<8x120xf32> to vector<8x120xbf16>
    %c0_1 = arith.constant 0 : index
    %c0_2 = arith.constant 0 : index
    %2 = vector.load %arg2[%c0_1, %c0_2] : memref<120x64xbf16, #tpu.memory_space<vmem>>, vector<120x64xbf16>
    %cst = arith.constant dense<0.000000e+00> : vector<8x64xf32>
    %3 = tpu.matmul %1, %2, %cst {dimension_numbers = #tpu.dot_dimension_numbers<[1], [0], [0], [1], [0, 0, 1, 1], [], []>} : vector<8x120xbf16>, vector<120x64xbf16>, vector<8x64xf32> -> vector<8x64xf32>
    %c0_3 = arith.constant 0 : index
    %c0_4 = arith.constant 0 : index
    %4 = vector.load %arg6[%c0_3, %c0_4] : memref<1x64xf32, #tpu.memory_space<vmem>>, vector<1x64xf32>
    %5 = vector.broadcast %4 : vector<1x64xf32> to vector<8x64xf32>
    %6 = arith.addf %3, %5 : vector<8x64xf32>
    %cst_5 = arith.constant 0.000000e+00 : f32
    %7 = vector.broadcast %cst_5 : f32 to vector<8x64xf32>
    %8 = arith.maximumf %6, %7 : vector<8x64xf32>
    %9 = arith.truncf %8 : vector<8x64xf32> to vector<8x64xbf16>
    %c0_6 = arith.constant 0 : index
    %c0_7 = arith.constant 0 : index
    %10 = vector.load %arg3[%c0_6, %c0_7] : memref<64x64xbf16, #tpu.memory_space<vmem>>, vector<64x64xbf16>
    %cst_8 = arith.constant dense<0.000000e+00> : vector<8x64xf32>
    %11 = tpu.matmul %9, %10, %cst_8 {dimension_numbers = #tpu.dot_dimension_numbers<[1], [0], [0], [1], [0, 0, 1, 1], [], []>} : vector<8x64xbf16>, vector<64x64xbf16>, vector<8x64xf32> -> vector<8x64xf32>
    %c0_9 = arith.constant 0 : index
    %c0_10 = arith.constant 0 : index
    %12 = vector.load %arg7[%c0_9, %c0_10] : memref<1x64xf32, #tpu.memory_space<vmem>>, vector<1x64xf32>
    %13 = vector.broadcast %12 : vector<1x64xf32> to vector<8x64xf32>
    %14 = arith.addf %11, %13 : vector<8x64xf32>
    %cst_11 = arith.constant 0.000000e+00 : f32
    %15 = vector.broadcast %cst_11 : f32 to vector<8x64xf32>
    %16 = arith.maximumf %14, %15 : vector<8x64xf32>
    %17 = arith.truncf %16 : vector<8x64xf32> to vector<8x64xbf16>
    %c0_12 = arith.constant 0 : index
    %c0_13 = arith.constant 0 : index
    %18 = vector.load %arg4[%c0_12, %c0_13] : memref<64x64xbf16, #tpu.memory_space<vmem>>, vector<64x64xbf16>
    %cst_14 = arith.constant dense<0.000000e+00> : vector<8x64xf32>
    %19 = tpu.matmul %17, %18, %cst_14 {dimension_numbers = #tpu.dot_dimension_numbers<[1], [0], [0], [1], [0, 0, 1, 1], [], []>} : vector<8x64xbf16>, vector<64x64xbf16>, vector<8x64xf32> -> vector<8x64xf32>
    %c0_15 = arith.constant 0 : index
    %c0_16 = arith.constant 0 : index
    %20 = vector.load %arg8[%c0_15, %c0_16] : memref<1x64xf32, #tpu.memory_space<vmem>>, vector<1x64xf32>
    %21 = vector.broadcast %20 : vector<1x64xf32> to vector<8x64xf32>
    %22 = arith.addf %19, %21 : vector<8x64xf32>
    %cst_17 = arith.constant 0.000000e+00 : f32
    %23 = vector.broadcast %cst_17 : f32 to vector<8x64xf32>
    %24 = arith.maximumf %22, %23 : vector<8x64xf32>
    %25 = arith.truncf %24 : vector<8x64xf32> to vector<8x64xbf16>
    %c0_18 = arith.constant 0 : index
    %c0_19 = arith.constant 0 : index
    %26 = vector.load %arg5[%c0_18, %c0_19] : memref<64x8xbf16, #tpu.memory_space<vmem>>, vector<64x8xbf16>
    %cst_20 = arith.constant dense<0.000000e+00> : vector<8x8xf32>
    %27 = tpu.matmul %25, %26, %cst_20 {dimension_numbers = #tpu.dot_dimension_numbers<[1], [0], [0], [1], [0, 0, 1, 1], [], []>} : vector<8x64xbf16>, vector<64x8xbf16>, vector<8x8xf32> -> vector<8x8xf32>
    %c0_21 = arith.constant 0 : index
    %c0_22 = arith.constant 0 : index
    %28 = vector.load %arg9[%c0_21, %c0_22] : memref<1x8xf32, #tpu.memory_space<vmem>>, vector<1x8xf32>
    %29 = vector.broadcast %28 : vector<1x8xf32> to vector<8x8xf32>
    %30 = arith.addf %27, %29 : vector<8x8xf32>
    %c0_23 = arith.constant 0 : index
    %c0_24 = arith.constant 0 : index
    %31 = vector.load %arg10[%c0_23, %c0_24] : memref<8x8xf32, #tpu.memory_space<vmem>>, vector<8x8xf32>
    tpu.vector_store %arg10[%c0_23, %c0_24], %30 {strides = array<i32>} : memref<8x8xf32, #tpu.memory_space<vmem>>, vector<8x8xf32>,
    return
  }
  func.func @transform_0(%arg0: i32) -> (i32, i32) {
    %c0_i32 = arith.constant 0 : i32
    %c0_i32_0 = arith.constant 0 : i32
    return %arg0, %c0_i32 : i32, i32
  }
  func.func @transform_1(%arg0: i32) -> (i32, i32) {
    %c0_i32 = arith.constant 0 : i32
    %c0_i32_0 = arith.constant 0 : i32
    %c0_i32_1 = arith.constant 0 : i32
    return %c0_i32, %c0_i32_0 : i32, i32
  }
  func.func @transform_2(%arg0: i32) -> (i32, i32) {
    %c0_i32 = arith.constant 0 : i32
    %c0_i32_0 = arith.constant 0 : i32
    %c0_i32_1 = arith.constant 0 : i32
    return %c0_i32, %c0_i32_0 : i32, i32
  }
  func.func @transform_3(%arg0: i32) -> (i32, i32) {
    %c0_i32 = arith.constant 0 : i32
    %c0_i32_0 = arith.constant 0 : i32
    %c0_i32_1 = arith.constant 0 : i32
    return %c0_i32, %c0_i32_0 : i32, i32
  }
  func.func @transform_4(%arg0: i32) -> (i32, i32) {
    %c0_i32 = arith.constant 0 : i32
    %c0_i32_0 = arith.constant 0 : i32
    %c0_i32_1 = arith.constant 0 : i32
    return %c0_i32, %c0_i32_0 : i32, i32
  }
  func.func @transform_5(%arg0: i32) -> (i32, i32) {
    %c0_i32 = arith.constant 0 : i32
    %c0_i32_0 = arith.constant 0 : i32
    %c0_i32_1 = arith.constant 0 : i32
    return %c0_i32, %c0_i32_0 : i32, i32
  }
  func.func @transform_6(%arg0: i32) -> (i32, i32) {
    %c0_i32 = arith.constant 0 : i32
    %c0_i32_0 = arith.constant 0 : i32
    %c0_i32_1 = arith.constant 0 : i32
    return %c0_i32, %c0_i32_0 : i32, i32
  }
  func.func @transform_7(%arg0: i32) -> (i32, i32) {
    %c0_i32 = arith.constant 0 : i32
    %c0_i32_0 = arith.constant 0 : i32
    %c0_i32_1 = arith.constant 0 : i32
    return %c0_i32, %c0_i32_0 : i32, i32
  }
  func.func @transform_8(%arg0: i32) -> (i32, i32) {
    %c0_i32 = arith.constant 0 : i32
    %c0_i32_0 = arith.constant 0 : i32
    %c0_i32_1 = arith.constant 0 : i32
    return %c0_i32, %c0_i32_0 : i32, i32
  }
  func.func @transform_9(%arg0: i32) -> (i32, i32) {
    %c0_i32 = arith.constant 0 : i32
    %c0_i32_0 = arith.constant 0 : i32
    return %arg0, %c0_i32 : i32, i32
  }
}

</mosaic_0001>

<llo_original>
// kernel: tpu_custom_call.1
$region0: #{tpu_custom_call.1}
  #allocation0 [shape = 'u32[]', space=smem, size = 0x4, offset = 0x4, fixed_abs, tag = 'smem constant byte address 0x4 - core index']
  #allocation1 [shape = 'u32[144,128]{1,0:T(1,128)}', space=vmem, size = 0x12000, scoped, tag = 'internal scratch']
  %s0 = inlined_call_operand.vmem [shape: f32[8,120], index: 0, kind: input, shape index: {}]
  %s1 = inlined_call_operand.vmem [shape: bf16[120,64], index: 1, kind: input, shape index: {}]
  %s2 = inlined_call_operand.vmem [shape: bf16[64,64], index: 2, kind: input, shape index: {}]
  %s3 = inlined_call_operand.vmem [shape: bf16[64,64], index: 3, kind: input, shape index: {}]
  %s4 = inlined_call_operand.vmem [shape: bf16[64,8], index: 4, kind: input, shape index: {}]
  %s5 = inlined_call_operand.vmem [shape: f32[1,64], index: 5, kind: input, shape index: {}]
  %s6 = inlined_call_operand.vmem [shape: f32[1,64], index: 6, kind: input, shape index: {}]
  %s7 = inlined_call_operand.vmem [shape: f32[1,64], index: 7, kind: input, shape index: {}]
  %s8 = inlined_call_operand.vmem [shape: f32[1,8], index: 8, kind: input, shape index: {}]
  %s9 = inlined_call_operand.hbm [shape: f32[8,8], index: 9, kind: output, shape index: {}]
  %s10 = sld [smem:[#allocation0]]
  $region46: #{tpu_custom_call.1} parent=0
    _
  %s12 = ssub.s32 1, %s10
  %s13 = scalar_select 0, %s12, %s10
  $region1: #{tpu_custom_call.1} parent=0
    #allocation2 [shape = 'u8[4096]{0}', space=vmem, size = 0x1000, scoped, tag = 'output window, operand 0, single buffered']
    #allocation3 [shape = 's32[1]{0}', space=sflag, size = 0x4, scoped, tag = 'scoped memory for tpu_custom_call.1']
    %14 = vsyncpa [#allocation3], 0
    // Predicated region
    $region2: #{tpu_custom_call.1} parent=1 // pred_check
      _
    $region3: #{tpu_custom_call.1} parent=1 // pred_check_branch
      %16 = sbr.rel (0) target = $region5
    $region4: #{tpu_custom_call.1} parent=1 // pred_region
      _
    $region5: #{tpu_custom_call.1} parent=1 // pred_fallthru
      _
    // Predicated region
    $region6: #{tpu_custom_call.1} parent=1 // pred_check
      _
    $region7: #{tpu_custom_call.1} parent=1 // pred_check_branch
      %18 = sbr.rel (0) target = $region9
    $region8: #{tpu_custom_call.1} parent=1 // pred_region
      _
    $region9: #{tpu_custom_call.1} parent=1 // pred_fallthru
      _
    // Predicated region
    $region10: #{tpu_custom_call.1} parent=1 // pred_check
      _
    $region11: #{tpu_custom_call.1} parent=1 // pred_check_branch
      %20 = sbr.rel (0) target = $region13
    $region12: #{tpu_custom_call.1} parent=1 // pred_region
      _
    $region13: #{tpu_custom_call.1} parent=1 // pred_fallthru
      _
    // Predicated region
    $region14: #{tpu_custom_call.1} parent=1 // pred_check
      _
    $region15: #{tpu_custom_call.1} parent=1 // pred_check_branch
      %22 = sbr.rel (0) target = $region17
    $region16: #{tpu_custom_call.1} parent=1 // pred_region
      _
    $region17: #{tpu_custom_call.1} parent=1 // pred_fallthru
      _
    // Predicated region
    $region18: #{tpu_custom_call.1} parent=1 // pred_check
      _
    $region19: #{tpu_custom_call.1} parent=1 // pred_check_branch
      %24 = sbr.rel (0) target = $region21
    $region20: #{tpu_custom_call.1} parent=1 // pred_region
      _
    $region21: #{tpu_custom_call.1} parent=1 // pred_fallthru
      _
    // Predicated region
    $region22: #{tpu_custom_call.1} parent=1 // pred_check
      _
    $region23: #{tpu_custom_call.1} parent=1 // pred_check_branch
      %26 = sbr.rel (0) target = $region25
    $region24: #{tpu_custom_call.1} parent=1 // pred_region
      _
    $region25: #{tpu_custom_call.1} parent=1 // pred_fallthru
      _
    // Predicated region
    $region26: #{tpu_custom_call.1} parent=1 // pred_check
      _
    $region27: #{tpu_custom_call.1} parent=1 // pred_check_branch
      %28 = sbr.rel (0) target = $region29
    $region28: #{tpu_custom_call.1} parent=1 // pred_region
      _
    $region29: #{tpu_custom_call.1} parent=1 // pred_fallthru
      _
    // Predicated region
    $region30: #{tpu_custom_call.1} parent=1 // pred_check
      _
    $region31: #{tpu_custom_call.1} parent=1 // pred_check_branch
      %30 = sbr.rel (0) target = $region33
    $region32: #{tpu_custom_call.1} parent=1 // pred_region
      _
    $region33: #{tpu_custom_call.1} parent=1 // pred_fallthru
      _
    // Predicated region
    $region34: #{tpu_custom_call.1} parent=1 // pred_check
      _
    $region35: #{tpu_custom_call.1} parent=1 // pred_check_branch
      %32 = sbr.rel (0) target = $region37
    $region36: #{tpu_custom_call.1} parent=1 // pred_region
      _
    $region37: #{tpu_custom_call.1} parent=1 // pred_fallthru
      _
    %v34 = vld [vmem:[%s0] sm:$0xff]
    %v35 = vpack.c.bf16 %v34, %v34
    %v36 = vld [vmem:[%s1] sm:$0xf]
    %v37 = vld [vmem:[%s1 + $0x4] sm:$0xf]
    %v38 = vld [vmem:[%s1 + $0x8] sm:$0xf]
    %v39 = vld [vmem:[%s1 + $0xc] sm:$0xf]
    %v40 = vld [vmem:[%s1 + $0x10] sm:$0xf]
    %v41 = vld [vmem:[%s1 + $0x14] sm:$0xf]
    %v42 = vld [vmem:[%s1 + $0x18] sm:$0xf]
    %v43 = vld [vmem:[%s1 + $0x1c] sm:$0xf]
    %v44 = vld [vmem:[%s1 + $0x20] sm:$0xf]
    %v45 = vld [vmem:[%s1 + $0x24] sm:$0xf]
    %v46 = vld [vmem:[%s1 + $0x28] sm:$0xf]
    %v47 = vld [vmem:[%s1 + $0x2c] sm:$0xf]
    %v48 = vld [vmem:[%s1 + $0x30] sm:$0xf]
    %v49 = vld [vmem:[%s1 + $0x34] sm:$0xf]
    %v50 = vld [vmem:[%s1 + $0x38] sm:$0xf]
    %v51 = vld [vmem:[%s5] sm:$0x1]
    %v53 = vlaneseq
    %v54 = vshrl.u32 %v53, 7
    %v55 = vsub.s32 0, %v54
    %v56 = vrot.slane %v51, %v55
    %v73 = vunpack.c.l.b16 %v36
    %v74 = vunpack.c.l.b16 %v37
    %v75 = vunpack.c.l.b16 %v38
    %v76 = vunpack.c.l.b16 %v39
    %v77 = vunpack.c.l.b16 %v40
    %v78 = vunpack.c.l.b16 %v41
    %v79 = vunpack.c.l.b16 %v42
    %v80 = vunpack.c.l.b16 %v43
    %v81 = vunpack.c.l.b16 %v44
    %v82 = vunpack.c.l.b16 %v45
    %v83 = vunpack.c.l.b16 %v46
    %v84 = vunpack.c.l.b16 %v47
    %v85 = vunpack.c.l.b16 %v48
    %v86 = vunpack.c.l.b16 %v49
    %v87 = vunpack.c.l.b16 %v50
    %v88 = vpack.c.b16 %v74, %v73
    %v89 = vpack.c.b16 %v76, %v75
    %v90 = vpack.c.b16 %v78, %v77
    %v91 = vpack.c.b16 %v80, %v79
    %v92 = vpack.c.b16 %v82, %v81
    %v93 = vpack.c.b16 %v84, %v83
    %v94 = vpack.c.b16 %v86, %v85
    %v95 = vpack.c.b16 %v87, %v87
    %vm103 = vcmask 982016
    %v105 = vsel %vm103, %v35, 0
    %vm107 = vcmask 1043456
    %v109 = vsel %vm107, %v95, 0
    %111 = vmatprep.subr.bf16.mxu0 0
    %112 = vmatpush1.bf16.msra.mxu0 %v88
    %113 = vmatprep.subr.bf16.mxu0 0
    %114 = vmatpush1.bf16.msra.mxu0 %v89
    %115 = vmatprep.subr.bf16.mxu0 0
    %116 = vmatpush1.bf16.msra.mxu0 %v90
    %117 = vmatprep.subr.bf16.mxu0 0
    %118 = vmatpush1.bf16.msra.mxu0 %v91
    %119 = vmatprep.subr.bf16.mxu0 0
    %120 = vmatpush1.bf16.msra.mxu0 %v92
    %121 = vmatprep.subr.bf16.mxu0 0
    %122 = vmatpush1.bf16.msra.mxu0 %v93
    %123 = vmatprep.subr.bf16.mxu0 0
    %124 = vmatpush1.bf16.msra.mxu0 %v94
    %125 = vmatprep.subr.bf16.mxu0 0
    %126 = vmatpush1.bf16.msra.mxu0 %v109
    %127 = vmatprep.subr.bf16.mxu0 0
    %128 = vmatpush1.bf16.msra.mxu0 0
    %129 = vmatprep.subr.bf16.mxu0 0
    %130 = vmatpush1.bf16.msra.mxu0 0
    %131 = vmatprep.subr.bf16.mxu0 0
    %132 = vmatpush1.bf16.msra.mxu0 0
    %133 = vmatprep.subr.bf16.mxu0 0
    %134 = vmatpush1.bf16.msra.mxu0 0
    %135 = vmatprep.subr.bf16.mxu0 0
    %136 = vmatpush1.bf16.msra.mxu0 0
    %137 = vmatprep.subr.bf16.mxu0 0
    %138 = vmatpush1.bf16.msra.mxu0 0
    %139 = vmatprep.subr.bf16.mxu0 0
    %140 = vmatpush1.bf16.msra.mxu0 0
    %141 = vmatprep.subr.bf16.mxu0 0
    %142 = vmatpush1.bf16.msra.mxu0 0
    %143 = vmatprep.mubr.bf16.mxu0 0
    %144 = vmatmul.mubr.bf16.gmra.mrb[0].mxu0 %v105
    %v145 = vpop.f32.mrb[0].mxu0
    %v146 = vadd.f32 %v56, %v145
    %v147 = vpop.f32.mrb[0].mxu0
    %v148 = vpop.f32.mrb[0].mxu0
    %v149 = vpop.f32.mrb[0].mxu0
    %150 = vdwg.mxu0
    %v151 = vmax.f32 %v146, 0.0
    %v152 = vpack.c.bf16 %v151, %v151
    %v153 = vld [vmem:[%s2] sm:$0xf]
    %v154 = vld [vmem:[%s2 + $0x4] sm:$0xf]
    %v155 = vld [vmem:[%s2 + $0x8] sm:$0xf]
    %v156 = vld [vmem:[%s2 + $0xc] sm:$0xf]
    %v157 = vld [vmem:[%s2 + $0x10] sm:$0xf]
    %v158 = vld [vmem:[%s2 + $0x14] sm:$0xf]
    %v159 = vld [vmem:[%s2 + $0x18] sm:$0xf]
    %v160 = vld [vmem:[%s2 + $0x1c] sm:$0xf]
    %v161 = vld [vmem:[%s6] sm:$0x1]
    %v163 = vlaneseq
    %v164 = vshrl.u32 %v163, 7
    %v165 = vsub.s32 0, %v164
    %v166 = vrot.slane %v161, %v165
    %v176 = vunpack.c.l.b16 %v153
    %v177 = vunpack.c.l.b16 %v154
    %v178 = vunpack.c.l.b16 %v155
    %v179 = vunpack.c.l.b16 %v156
    %v180 = vunpack.c.l.b16 %v157
    %v181 = vunpack.c.l.b16 %v158
    %v182 = vunpack.c.l.b16 %v159
    %v183 = vunpack.c.l.b16 %v160
    %v184 = vpack.c.b16 %v177, %v176
    %v185 = vpack.c.b16 %v179, %v178
    %v186 = vpack.c.b16 %v181, %v180
    %v187 = vpack.c.b16 %v183, %v182
    %vm192 = vcmask 523264
    %v194 = vsel %vm192, %v152, 0
    %196 = vmatprep.subr.bf16.mxu0 0
    %197 = vmatpush1.bf16.msra.mxu0 %v184
    %198 = vmatprep.subr.bf16.mxu0 0
    %199 = vmatpush1.bf16.msra.mxu0 %v185
    %200 = vmatprep.subr.bf16.mxu0 0
    %201 = vmatpush1.bf16.msra.mxu0 %v186
    %202 = vmatprep.subr.bf16.mxu0 0
    %203 = vmatpush1.bf16.msra.mxu0 %v187
    %204 = vmatprep.subr.bf16.mxu0 0
    %205 = vmatpush1.bf16.msra.mxu0 0
    %206 = vmatprep.subr.bf16.mxu0 0
    %207 = vmatpush1.bf16.msra.mxu0 0
    %208 = vmatprep.subr.bf16.mxu0 0
    %209 = vmatpush1.bf16.msra.mxu0 0
    %210 = vmatprep.subr.bf16.mxu0 0
    %211 = vmatpush1.bf16.msra.mxu0 0
    %212 = vmatprep.subr.bf16.mxu0 0
    %213 = vmatpush1.bf16.msra.mxu0 0
    %214 = vmatprep.subr.bf16.mxu0 0
    %215 = vmatpush1.bf16.msra.mxu0 0
    %216 = vmatprep.subr.bf16.mxu0 0
    %217 = vmatpush1.bf16.msra.mxu0 0
    %218 = vmatprep.subr.bf16.mxu0 0
    %219 = vmatpush1.bf16.msra.mxu0 0
    %220 = vmatprep.subr.bf16.mxu0 0
    %221 = vmatpush1.bf16.msra.mxu0 0
    %222 = vmatprep.subr.bf16.mxu0 0
    %223 = vmatpush1.bf16.msra.mxu0 0
    %224 = vmatprep.subr.bf16.mxu0 0
    %225 = vmatpush1.bf16.msra.mxu0 0
    %226 = vmatprep.subr.bf16.mxu0 0
    %227 = vmatpush1.bf16.msra.mxu0 0
    %228 = vmatprep.mubr.bf16.mxu0 0
    %229 = vmatmul.mubr.bf16.gmra.mrb[0].mxu0 %v194
    %v230 = vpop.f32.mrb[0].mxu0
    %v231 = vadd.f32 %v166, %v230
    %v232 = vpop.f32.mrb[0].mxu0
    %v233 = vpop.f32.mrb[0].mxu0
    %v234 = vpop.f32.mrb[0].mxu0
    %235 = vdwg.mxu0
    %v236 = vmax.f32 %v231, 0.0
    %v237 = vpack.c.bf16 %v236, %v236
    %v238 = vld [vmem:[%s3] sm:$0xf]
    %v239 = vld [vmem:[%s3 + $0x4] sm:$0xf]
    %v240 = vld [vmem:[%s3 + $0x8] sm:$0xf]
    %v241 = vld [vmem:[%s3 + $0xc] sm:$0xf]
    %v242 = vld [vmem:[%s3 + $0x10] sm:$0xf]
    %v243 = vld [vmem:[%s3 + $0x14] sm:$0xf]
    %v244 = vld [vmem:[%s3 + $0x18] sm:$0xf]
    %v245 = vld [vmem:[%s3 + $0x1c] sm:$0xf]
    %v246 = vld [vmem:[%s7] sm:$0x1]
    %v248 = vlaneseq
    %v249 = vshrl.u32 %v248, 7
    %v250 = vsub.s32 0, %v249
    %v251 = vrot.slane %v246, %v250
    %v261 = vunpack.c.l.b16 %v238
    %v262 = vunpack.c.l.b16 %v239
    %v263 = vunpack.c.l.b16 %v240
    %v264 = vunpack.c.l.b16 %v241
    %v265 = vunpack.c.l.b16 %v242
    %v266 = vunpack.c.l.b16 %v243
    %v267 = vunpack.c.l.b16 %v244
    %v268 = vunpack.c.l.b16 %v245
    %v269 = vpack.c.b16 %v262, %v261
    %v270 = vpack.c.b16 %v264, %v263
    %v271 = vpack.c.b16 %v266, %v265
    %v272 = vpack.c.b16 %v268, %v267
    %v278 = vsel %vm192, %v237, 0
    %280 = vmatprep.subr.bf16.mxu0 0
    %281 = vmatpush1.bf16.msra.mxu0 %v269
    %282 = vmatprep.subr.bf16.mxu0 0
    %283 = vmatpush1.bf16.msra.mxu0 %v270
    %284 = vmatprep.subr.bf16.mxu0 0
    %285 = vmatpush1.bf16.msra.mxu0 %v271
    %286 = vmatprep.subr.bf16.mxu0 0
    %287 = vmatpush1.bf16.msra.mxu0 %v272
    %288 = vmatprep.subr.bf16.mxu0 0
    %289 = vmatpush1.bf16.msra.mxu0 0
    %290 = vmatprep.subr.bf16.mxu0 0
    %291 = vmatpush1.bf16.msra.mxu0 0
    %292 = vmatprep.subr.bf16.mxu0 0
    %293 = vmatpush1.bf16.msra.mxu0 0
    %294 = vmatprep.subr.bf16.mxu0 0
    %295 = vmatpush1.bf16.msra.mxu0 0
    %296 = vmatprep.subr.bf16.mxu0 0
    %297 = vmatpush1.bf16.msra.mxu0 0
    %298 = vmatprep.subr.bf16.mxu0 0
    %299 = vmatpush1.bf16.msra.mxu0 0
    %300 = vmatprep.subr.bf16.mxu0 0
    %301 = vmatpush1.bf16.msra.mxu0 0
    %302 = vmatprep.subr.bf16.mxu0 0
    %303 = vmatpush1.bf16.msra.mxu0 0
    %304 = vmatprep.subr.bf16.mxu0 0
    %305 = vmatpush1.bf16.msra.mxu0 0
    %306 = vmatprep.subr.bf16.mxu0 0
    %307 = vmatpush1.bf16.msra.mxu0 0
    %308 = vmatprep.subr.bf16.mxu0 0
    %309 = vmatpush1.bf16.msra.mxu0 0
    %310 = vmatprep.subr.bf16.mxu0 0
    %311 = vmatpush1.bf16.msra.mxu0 0
    %312 = vmatprep.mubr.bf16.mxu0 0
    %313 = vmatmul.mubr.bf16.gmra.mrb[0].mxu0 %v278
    %v314 = vpop.f32.mrb[0].mxu0
    %v315 = vadd.f32 %v251, %v314
    %v316 = vpop.f32.mrb[0].mxu0
    %v317 = vpop.f32.mrb[0].mxu0
    %v318 = vpop.f32.mrb[0].mxu0
    %319 = vdwg.mxu0
    %v320 = vmax.f32 %v315, 0.0
    %v321 = vpack.c.bf16 %v320, %v320
    %v322 = vld [vmem:[%s4] sm:$0xf]
    %v323 = vld [vmem:[%s4 + $0x4] sm:$0xf]
    %v324 = vld [vmem:[%s4 + $0x8] sm:$0xf]
    %v325 = vld [vmem:[%s4 + $0xc] sm:$0xf]
    %v326 = vld [vmem:[%s4 + $0x10] sm:$0xf]
    %v327 = vld [vmem:[%s4 + $0x14] sm:$0xf]
    %v328 = vld [vmem:[%s4 + $0x18] sm:$0xf]
    %v329 = vld [vmem:[%s4 + $0x1c] sm:$0xf]
    %v330 = vld [vmem:[%s8] sm:$0x1]
    %v332 = vlaneseq
    %v333 = vshrl.u32 %v332, 7
    %v334 = vsub.s32 0, %v333
    %v335 = vrot.slane %v330, %v334
    %v345 = vunpack.c.l.b16 %v322
    %v346 = vunpack.c.l.b16 %v323
    %v347 = vunpack.c.l.b16 %v324
    %v348 = vunpack.c.l.b16 %v325
    %v349 = vunpack.c.l.b16 %v326
    %v350 = vunpack.c.l.b16 %v327
    %v351 = vunpack.c.l.b16 %v328
    %v352 = vunpack.c.l.b16 %v329
    %v353 = vpack.c.b16 %v346, %v345
    %v354 = vpack.c.b16 %v348, %v347
    %v355 = vpack.c.b16 %v350, %v349
    %v356 = vpack.c.b16 %v352, %v351
    %v362 = vsel %vm192, %v321, 0
    %364 = vmatprep.subr.bf16.mxu0 0
    %365 = vmatpush1.bf16.msra.mxu0 %v353
    %366 = vmatprep.subr.bf16.mxu0 0
    %367 = vmatpush1.bf16.msra.mxu0 %v354
    %368 = vmatprep.subr.bf16.mxu0 0
    %369 = vmatpush1.bf16.msra.mxu0 %v355
    %370 = vmatprep.subr.bf16.mxu0 0
    %371 = vmatpush1.bf16.msra.mxu0 %v356
    %372 = vmatprep.subr.bf16.mxu0 0
    %373 = vmatpush1.bf16.msra.mxu0 0
    %374 = vmatprep.subr.bf16.mxu0 0
    %375 = vmatpush1.bf16.msra.mxu0 0
    %376 = vmatprep.subr.bf16.mxu0 0
    %377 = vmatpush1.bf16.msra.mxu0 0
    %378 = vmatprep.subr.bf16.mxu0 0
    %379 = vmatpush1.bf16.msra.mxu0 0
    %380 = vmatprep.subr.bf16.mxu0 0
    %381 = vmatpush1.bf16.msra.mxu0 0
    %382 = vmatprep.subr.bf16.mxu0 0
    %383 = vmatpush1.bf16.msra.mxu0 0
    %384 = vmatprep.subr.bf16.mxu0 0
    %385 = vmatpush1.bf16.msra.mxu0 0
    %386 = vmatprep.subr.bf16.mxu0 0
    %387 = vmatpush1.bf16.msra.mxu0 0
    %388 = vmatprep.subr.bf16.mxu0 0
    %389 = vmatpush1.bf16.msra.mxu0 0
    %390 = vmatprep.subr.bf16.mxu0 0
    %391 = vmatpush1.bf16.msra.mxu0 0
    %392 = vmatprep.subr.bf16.mxu0 0
    %393 = vmatpush1.bf16.msra.mxu0 0
    %394 = vmatprep.subr.bf16.mxu0 0
    %395 = vmatpush1.bf16.msra.mxu0 0
    %396 = vmatprep.mubr.bf16.mxu0 0
    %397 = vmatmul.mubr.bf16.gmra.mrb[0].mxu0 %v362
    %v398 = vpop.f32.mrb[0].mxu0
    %v399 = vadd.f32 %v335, %v398
    %v400 = vpop.f32.mrb[0].mxu0
    %v401 = vpop.f32.mrb[0].mxu0
    %v402 = vpop.f32.mrb[0].mxu0
    %403 = vdwg.mxu0
    %vm404 = vcmask 64512
    %405 = vst.msk [vmem:[#allocation2] sm:$0xff] %vm404, %v399
    // Predicated region
    $region38: #{tpu_custom_call.1} parent=1 // pred_check
      _
    $region39: #{tpu_custom_call.1} parent=1 // pred_check_branch
      %407 = sbr.rel (0) target = $region41
    $region40: #{tpu_custom_call.1} parent=1 // pred_region
      %s409 = ssub.s32 128, 128
      %410 = vsyncadd [#allocation3], %s409
      %s412 = sshll.u32 [#allocation2], 4
      %s413 = int_to_ptr.vmem [resolvable:$true] %s412
      %415 = dma.vmem_to_hbm [thread:$0]  %s413, 128, %s9, [#allocation3]
    $region41: #{tpu_custom_call.1} parent=1 // pred_fallthru
      _
    // Predicated region
    $region42: #{tpu_custom_call.1} parent=1 // pred_check
      _
    $region43: #{tpu_custom_call.1} parent=1 // pred_check_branch
      %417 = sbr.rel (0) target = $region45
    $region44: #{tpu_custom_call.1} parent=1 // pred_region
      %418 = dma.done [#allocation3], 128
    $region45: #{tpu_custom_call.1} parent=1 // pred_fallthru
      _
    %419 = vsyncpa [#allocation3], 1

</llo_original>
